<compile_context>
chip_gen: v5e
topology: v5e:2x2
jax: 0.10.0
libtpu: 0.0.40
codegen_flags: <defaults>
</compile_context>

<pallas_src>
import jax
import jax.numpy as jnp
from jax.experimental import pallas as pl
from jax.experimental.pallas import tpu as pltpu


def _round_up(x, m):
    return ((x + m - 1) // m) * m


def _pad2d(a, rows, cols):
    """Zero-pad a 2-D array up to (rows, cols) with a single pad op."""
    r, c = a.shape
    if (r, c) == (rows, cols):
        return a
    return jnp.pad(a, ((0, rows - r), (0, cols - c)))


# ---------------------------------------------------------------------------
# Kernels
# ---------------------------------------------------------------------------
def _matmul_kernel(x_ref, labT_ref, o_ref):
    """o = x @ labT, full contraction in one MXU dot (paths A and B)."""
    o_ref[...] = jnp.dot(
        x_ref[...], labT_ref[...], preferred_element_type=jnp.float32
    ).astype(o_ref.dtype)


def _matmul_acc_kernel(x_ref, labT_ref, o_ref):
    """Tiled path C: accumulate partial products directly into the f32 output
    block (resident across the innermost K grid axis); no scratch, no copy."""
    @pl.when(pl.program_id(2) == 0)
    def _():
        o_ref[...] = jnp.zeros_like(o_ref)

    o_ref[...] += jnp.dot(
        x_ref[...], labT_ref[...], preferred_element_type=jnp.float32
    )


# ---------------------------------------------------------------------------
# Wrapper
# ---------------------------------------------------------------------------
def label_verbalizer_decoder_forward(
    inputs,
    label_tensor,
    *,
    tm=128,
    tn=256,
    tk=512,
    single_block_byte_limit=4 * 1024 * 1024,
    resident_label_byte_limit=8 * 1024 * 1024,
):
    """scores = inputs @ label_tensor.T  via Pallas TPU kernels.

    inputs:       (N, D)
    label_tensor: (L, D)
    returns:      (N, L) float32
    """
    N, D = inputs.shape
    L, D2 = label_tensor.shape
    if D != D2:
        raise ValueError(f"hidden-dim mismatch: inputs D={D}, labels D={D2}")

    out_dtype = jnp.float32
    itemsize = jnp.dtype(inputs.dtype).itemsize

    # Pre-transpose the label matrix once in the wrapper (amortized over all
    # row tiles) so the kernel never transposes through the XLU.
    labels_T = label_tensor.T  # (D, L)

    # ---------------- Path A: single block, no grid (small problems) --------
    total_bytes = (N * D + D * L) * itemsize + N * L * 4
    if total_bytes <= single_block_byte_limit:
        return pl.pallas_call(
            _matmul_kernel,
            out_shape=jax.ShapeDtypeStruct((N, L), out_dtype),
        )(inputs, labels_T)

    # ---------------- Path B: labels resident in VMEM, tile rows only -------
    label_bytes = D * L * itemsize
    if label_bytes <= resident_label_byte_limit:
        tm_eff = min(tm, _round_up(N, 8))
        N_pad = _round_up(N, tm_eff)
        # Lane-pad the label axis so output stores are unmasked, lane-dense.
        L_pad = _round_up(L, 128)

        x = _pad2d(inputs, N_pad, D)
        lt = _pad2d(labels_T, D, L_pad)

        out = pl.pallas_call(
            _matmul_kernel,
            out_shape=jax.ShapeDtypeStruct((N_pad, L_pad), out_dtype),
            grid_spec=pltpu.PrefetchScalarGridSpec(
                num_scalar_prefetch=0,
                grid=(N_pad // tm_eff,),
                in_specs=[
                    # (tm, D) row tile of the inputs, marches down the rows.
                    pl.BlockSpec((tm_eff, D), lambda i: (i, 0)),
                    # Full label matrix; constant block index -> DMA'd once and
                    # reused by every row tile.
                    pl.BlockSpec((D, L_pad), lambda i: (0, 0)),
                ],
                out_specs=pl.BlockSpec((tm_eff, L_pad), lambda i: (i, 0)),
            ),
            compiler_params=pltpu.CompilerParams(
                dimension_semantics=("parallel",),
                vmem_limit_bytes=48 * 1024 * 1024,  # headroom for v7x 64 MiB/TC
            ),
        )(x, lt)
        return out[:N, :L]

    # ---------------- Path C: fully tiled fallback (huge label matrices) ----
    tm_eff = min(tm, _round_up(N, 128))
    tn_eff = min(tn, _round_up(L, 128))
    tk_eff = min(tk, _round_up(D, 128))
    N_pad = _round_up(N, tm_eff)
    L_pad = _round_up(L, tn_eff)
    D_pad = _round_up(D, tk_eff)

    x = _pad2d(inputs, N_pad, D_pad)
    lt = _pad2d(labels_T, D_pad, L_pad)

    out = pl.pallas_call(
        _matmul_acc_kernel,
        out_shape=jax.ShapeDtypeStruct((N_pad, L_pad), out_dtype),
        grid_spec=pltpu.PrefetchScalarGridSpec(
            num_scalar_prefetch=0,
            grid=(N_pad // tm_eff, L_pad // tn_eff, D_pad // tk_eff),
            in_specs=[
                pl.BlockSpec((tm_eff, tk_eff), lambda i, j, k: (i, k)),
                pl.BlockSpec((tk_eff, tn_eff), lambda i, j, k: (k, j)),
            ],
            out_specs=pl.BlockSpec((tm_eff, tn_eff), lambda i, j, k: (i, j)),
        ),
        compiler_params=pltpu.CompilerParams(
            dimension_semantics=("parallel", "parallel", "arbitrary"),
            vmem_limit_bytes=48 * 1024 * 1024,
        ),
    )(x, lt)
    return out[:N, :L]


# ---------------------------------------------------------------------------
# Demo / correctness check
# ---------------------------------------------------------------------------
if __name__ == "__main__":
    key = jax.random.PRNGKey(0)
    k_in, k_lab, k_in2, k_lab2 = jax.random.split(key, 4)

    # Small shapes consistent with the forward pass:
    #   N = 16 tokens/spans to classify, D = 256 embedding dim, L = 128 labels.
    N, D, L = 16, 256, 128
    inputs = jax.random.normal(k_in, (N, D), dtype=jnp.float32)
    label_tensor = jax.random.normal(k_lab, (L, D), dtype=jnp.float32)

    # Path A (single block, no grid) on the demo shapes.
    scores = label_verbalizer_decoder_forward(inputs, label_tensor)
    scores = jax.block_until_ready(scores)
    ref = inputs @ label_tensor.T
    assert scores.shape == (N, L)
    assert jnp.allclose(scores, ref, atol=1e-4, rtol=1e-4)

    # Also exercise the tiled paths on small, non-aligned shapes
    # (force them by shrinking the byte thresholds).
    N2, D2, L2 = 300, 384, 96
    inputs2 = jax.random.normal(k_in2, (N2, D2), dtype=jnp.float32)
    labels2 = jax.random.normal(k_lab2, (L2, D2), dtype=jnp.float32)
    ref2 = inputs2 @ labels2.T

    scores_b = label_verbalizer_decoder_forward(
        inputs2, labels2, single_block_byte_limit=0
    )
    scores_b = jax.block_until_ready(scores_b)
    assert scores_b.shape == (N2, L2)
    assert jnp.allclose(scores_b, ref2, atol=1e-3, rtol=1e-3)

    scores_c = label_verbalizer_decoder_forward(
        inputs2, labels2, single_block_byte_limit=0, resident_label_byte_limit=0
    )
    scores_c = jax.block_until_ready(scores_c)
    assert scores_c.shape == (N2, L2)
    assert jnp.allclose(scores_c, ref2, atol=1e-3, rtol=1e-3)

    print("KERNEL_OK")
</pallas_src>

<mosaic_0001>
module attributes {stable_mosaic.version = 11 : i64} {
  func.func @_matmul_kernel(%arg0: memref<16x256xf32, #tpu.memory_space<vmem>>, %arg1: memref<256x128xf32, #tpu.memory_space<vmem>>, %arg2: memref<16x128xf32, #tpu.memory_space<vmem>>) attributes {dimension_semantics = [], scalar_prefetch = 0 : i64, scratch_operands = 0 : i64, tpu.core_type = #tpu.core_type<tc>} {
    %c0 = arith.constant 0 : index
    %c0_0 = arith.constant 0 : index
    %0 = vector.load %arg0[%c0, %c0_0] : memref<16x256xf32, #tpu.memory_space<vmem>>, vector<16x256xf32>
    %c0_1 = arith.constant 0 : index
    %c0_2 = arith.constant 0 : index
    %1 = vector.load %arg1[%c0_1, %c0_2] : memref<256x128xf32, #tpu.memory_space<vmem>>, vector<256x128xf32>
    %cst = arith.constant dense<0.000000e+00> : vector<16x128xf32>
    %2 = tpu.matmul %0, %1, %cst {dimension_numbers = #tpu.dot_dimension_numbers<[1], [0], [0], [1], [0, 0, 1, 1], [], []>} : vector<16x256xf32>, vector<256x128xf32>, vector<16x128xf32> -> vector<16x128xf32>
    %c0_3 = arith.constant 0 : index
    %c0_4 = arith.constant 0 : index
    %3 = vector.load %arg2[%c0_3, %c0_4] : memref<16x128xf32, #tpu.memory_space<vmem>>, vector<16x128xf32>
    tpu.vector_store %arg2[%c0_3, %c0_4], %2 {strides = array<i32>} : memref<16x128xf32, #tpu.memory_space<vmem>>, vector<16x128xf32>,
    return
  }
}

</mosaic_0001>

<llo_original>
// kernel: tpu_custom_call.1
$region0: #{tpu_custom_call.1}
  #allocation0 [shape = 'u32[]', space=smem, size = 0x4, offset = 0x4, fixed_abs, tag = 'smem constant byte address 0x4 - core index']
  #allocation1 [shape = 'u32[72,128]{1,0:T(1,128)}', space=vmem, size = 0x9000, scoped, tag = 'internal scratch']
  %s0 = inlined_call_operand.hbm [shape: f32[16,256], index: 0, kind: input, shape index: {}]
  %s1 = inlined_call_operand.hbm [shape: f32[256,128], index: 1, kind: input, shape index: {}]
  %s2 = inlined_call_operand.hbm [shape: f32[16,128], index: 2, kind: output, shape index: {}]
  %s3 = sld [smem:[#allocation0]]
  $region26: #{tpu_custom_call.1} parent=0
    _
  %s5 = ssub.s32 1, %s3
  %s6 = scalar_select 0, %s5, %s3
  $region1: #{tpu_custom_call.1} parent=0
    #allocation2 [shape = 'u8[16384]{0}', space=vmem, size = 0x4000, scoped, tag = 'input window, operand 0, single buffered']
    #allocation3 [shape = 's32[1]{0}', space=sflag, size = 0x4, scoped, tag = 'scoped memory for tpu_custom_call.1']
    #allocation4 [shape = 's32[1]{0}', space=sflag, size = 0x4, scoped, tag = 'scoped memory for tpu_custom_call.1']
    #allocation5 [shape = 'u8[131072]{0}', space=vmem, size = 0x20000, scoped, tag = 'input window, operand 1, single buffered']
    #allocation6 [shape = 's32[1]{0}', space=sflag, size = 0x4, scoped, tag = 'scoped memory for tpu_custom_call.1']
    #allocation7 [shape = 'u8[8192]{0}', space=vmem, size = 0x2000, scoped, tag = 'output window, operand 0, single buffered']
    %7 = vsyncpa [#allocation3], 0
    %8 = vsyncpa [#allocation6], 0
    %9 = vsyncpa [#allocation4], 0
    // Predicated region
    $region2: #{tpu_custom_call.1} parent=1 // pred_check
      _
    $region3: #{tpu_custom_call.1} parent=1 // pred_check_branch
      %11 = sbr.rel (0) target = $region5
    $region4: #{tpu_custom_call.1} parent=1 // pred_region
      %13 = vsyncadd [#allocation3], 0
      %s14 = sshll.u32 %s0, 4
      %s15 = int_to_ptr.hbm [resolvable:$true] %s14
      %s16 = sshll.u32 [#allocation2], 4
      %s17 = int_to_ptr.vmem [resolvable:$true] %s16
      %22 = dma.hbm_to_vmem [thread:$0]  %s15, 512, %s17, [#allocation3], 256, 256, 16
    $region5: #{tpu_custom_call.1} parent=1 // pred_fallthru
      _
    // Predicated region
    $region6: #{tpu_custom_call.1} parent=1 // pred_check
      _
    $region7: #{tpu_custom_call.1} parent=1 // pred_check_branch
      %24 = sbr.rel (0) target = $region9
    $region8: #{tpu_custom_call.1} parent=1 // pred_region
      %26 = vsyncadd [#allocation6], 0
      %s27 = sshll.u32 %s1, 4
      %s28 = int_to_ptr.hbm [resolvable:$true] %s27
      %s29 = sshll.u32 [#allocation5], 4
      %s30 = int_to_ptr.vmem [resolvable:$true] %s29
      %35 = dma.hbm_to_vmem [thread:$0]  %s28, 4096, %s30, [#allocation6], 128, 128, 8
    $region9: #{tpu_custom_call.1} parent=1 // pred_fallthru
      _
    // Predicated region
    $region10: #{tpu_custom_call.1} parent=1 // pred_check
      _
    $region11: #{tpu_custom_call.1} parent=1 // pred_check_branch
      %37 = sbr.rel (0) target = $region13
    $region12: #{tpu_custom_call.1} parent=1 // pred_region
      %39 = dma.done [#allocation3], 512
    $region13: #{tpu_custom_call.1} parent=1 // pred_fallthru
      _
    // Predicated region
    $region14: #{tpu_custom_call.1} parent=1 // pred_check
      _
    $region15: #{tpu_custom_call.1} parent=1 // pred_check_branch
      %41 = sbr.rel (0) target = $region17
    $region16: #{tpu_custom_call.1} parent=1 // pred_region
      %43 = dma.done [#allocation6], 4096
    $region17: #{tpu_custom_call.1} parent=1 // pred_fallthru
      _
    %v44 = vld [vmem:[#allocation2] sm:$0xff]
    %v45 = vld [vmem:[#allocation2 + $0x8] sm:$0xff]
    %v46 = vld [vmem:[#allocation2 + $0x10] sm:$0xff]
    %v47 = vld [vmem:[#allocation2 + $0x18] sm:$0xff]
    %v48 = vld [vmem:[#allocation5] sm:$0xff]
    %v49 = vld [vmem:[#allocation5 + $0x8] sm:$0xff]
    %v50 = vld [vmem:[#allocation5 + $0x10] sm:$0xff]
    %v51 = vld [vmem:[#allocation5 + $0x18] sm:$0xff]
    %v52 = vld [vmem:[#allocation5 + $0x20] sm:$0xff]
    %v53 = vld [vmem:[#allocation5 + $0x28] sm:$0xff]
    %v54 = vld [vmem:[#allocation5 + $0x30] sm:$0xff]
    %v55 = vld [vmem:[#allocation5 + $0x38] sm:$0xff]
    %v56 = vld [vmem:[#allocation5 + $0x40] sm:$0xff]
    %v57 = vld [vmem:[#allocation5 + $0x48] sm:$0xff]
    %v58 = vld [vmem:[#allocation5 + $0x50] sm:$0xff]
    %v59 = vld [vmem:[#allocation5 + $0x58] sm:$0xff]
    %v60 = vld [vmem:[#allocation5 + $0x60] sm:$0xff]
    %v61 = vld [vmem:[#allocation5 + $0x68] sm:$0xff]
    %v62 = vld [vmem:[#allocation5 + $0x70] sm:$0xff]
    %v63 = vld [vmem:[#allocation5 + $0x78] sm:$0xff]
    %v64 = vld [vmem:[#allocation5 + $0x80] sm:$0xff]
    %v65 = vld [vmem:[#allocation5 + $0x88] sm:$0xff]
    %v66 = vld [vmem:[#allocation5 + $0x90] sm:$0xff]
    %v67 = vld [vmem:[#allocation5 + $0x98] sm:$0xff]
    %v68 = vld [vmem:[#allocation5 + $0xa0] sm:$0xff]
    %v69 = vld [vmem:[#allocation5 + $0xa8] sm:$0xff]
    %v70 = vld [vmem:[#allocation5 + $0xb0] sm:$0xff]
    %v71 = vld [vmem:[#allocation5 + $0xb8] sm:$0xff]
    %v72 = vld [vmem:[#allocation5 + $0xc0] sm:$0xff]
    %v73 = vld [vmem:[#allocation5 + $0xc8] sm:$0xff]
    %v74 = vld [vmem:[#allocation5 + $0xd0] sm:$0xff]
    %v75 = vld [vmem:[#allocation5 + $0xd8] sm:$0xff]
    %v76 = vld [vmem:[#allocation5 + $0xe0] sm:$0xff]
    %v77 = vld [vmem:[#allocation5 + $0xe8] sm:$0xff]
    %v78 = vld [vmem:[#allocation5 + $0xf0] sm:$0xff]
    %v79 = vld [vmem:[#allocation5 + $0xf8] sm:$0xff]
    %80 = vmatpush.msra.mxu0 %v63
    %81 = vmatpush.msra.mxu0 %v62
    %82 = vmatpush.msra.mxu0 %v61
    %83 = vmatpush.msra.mxu0 %v60
    %84 = vmatpush.msra.mxu0 %v59
    %85 = vmatpush.msra.mxu0 %v58
    %86 = vmatpush.msra.mxu0 %v57
    %87 = vmatpush.msra.mxu0 %v56
    %88 = vmatpush.msra.mxu0 %v55
    %89 = vmatpush.msra.mxu0 %v54
    %90 = vmatpush.msra.mxu0 %v53
    %91 = vmatpush.msra.mxu0 %v52
    %92 = vmatpush.msra.mxu0 %v51
    %93 = vmatpush.msra.mxu0 %v50
    %94 = vmatpush.msra.mxu0 %v49
    %95 = vmatpush.msra.mxu0 %v48
    %96 = vmatmul.f32.gmra.mxu0 %v44
    %v97 = vpop.f32.mrf.mxu0
    %v98 = vadd.f32 0.0, %v97
    %99 = vmatmul.f32.gmra.mxu0 %v46
    %v100 = vpop.f32.mrf.mxu0
    %v101 = vadd.f32 0.0, %v100
    %102 = vdwg.mxu0
    %103 = vmatpush.msra.mxu0 %v79
    %104 = vmatpush.msra.mxu0 %v78
    %105 = vmatpush.msra.mxu0 %v77
    %106 = vmatpush.msra.mxu0 %v76
    %107 = vmatpush.msra.mxu0 %v75
    %108 = vmatpush.msra.mxu0 %v74
    %109 = vmatpush.msra.mxu0 %v73
    %110 = vmatpush.msra.mxu0 %v72
    %111 = vmatpush.msra.mxu0 %v71
    %112 = vmatpush.msra.mxu0 %v70
    %113 = vmatpush.msra.mxu0 %v69
    %114 = vmatpush.msra.mxu0 %v68
    %115 = vmatpush.msra.mxu0 %v67
    %116 = vmatpush.msra.mxu0 %v66
    %117 = vmatpush.msra.mxu0 %v65
    %118 = vmatpush.msra.mxu0 %v64
    %119 = vmatmul.f32.gmra.mxu0 %v45
    %v120 = vpop.f32.mrf.mxu0
    %v121 = vadd.f32 %v98, %v120
    %122 = vmatmul.f32.gmra.mxu0 %v47
    %v123 = vpop.f32.mrf.mxu0
    %v124 = vadd.f32 %v101, %v123
    %125 = vdwg.mxu0
    %126 = vst [vmem:[#allocation7] sm:$0xff] %v121
    %127 = vst [vmem:[#allocation7 + $0x8] sm:$0xff] %v124
    // Predicated region
    $region18: #{tpu_custom_call.1} parent=1 // pred_check
      _
    $region19: #{tpu_custom_call.1} parent=1 // pred_check_branch
      %129 = sbr.rel (0) target = $region21
    $region20: #{tpu_custom_call.1} parent=1 // pred_region
      %131 = vsyncadd [#allocation4], 0
      %s132 = sshll.u32 [#allocation7], 4
      %s133 = int_to_ptr.vmem [resolvable:$true] %s132
      %s134 = sshll.u32 %s2, 4
      %s135 = int_to_ptr.hbm [resolvable:$true] %s134
      %140 = dma.vmem_to_hbm [thread:$0]  %s133, 256, %s135, [#allocation4], 128, 128, 8
    $region21: #{tpu_custom_call.1} parent=1 // pred_fallthru
      _
    // Predicated region
    $region22: #{tpu_custom_call.1} parent=1 // pred_check
      _
    $region23: #{tpu_custom_call.1} parent=1 // pred_check_branch
      %142 = sbr.rel (0) target = $region25
    $region24: #{tpu_custom_call.1} parent=1 // pred_region
      %144 = dma.done [#allocation4], 256
    $region25: #{tpu_custom_call.1} parent=1 // pred_fallthru
      _
    %145 = vsyncpa [#allocation3], 1
    %146 = vsyncpa [#allocation6], 1
    %147 = vsyncpa [#allocation4], 1

</llo_original>
